<compile_context>
chip_gen: v7x
topology: tpu7x:2x2x1
jax: 0.10.0
libtpu: 0.0.40
codegen_flags: <defaults>
</compile_context>

<pallas_src>
import jax
import jax.numpy as jnp
from jax.experimental import pallas as pl
from jax.experimental.pallas import tpu as pltpu


def resblock_kernel(x_ref,
                    w1_ref, b1_ref, w2_ref, b2_ref,   # temporal MLP (expanded, bf16 W / f32 b)
                    w3_ref, b3_ref, w4_ref, b4_ref,   # channel  MLP (expanded, bf16 W / f32 b)
                    o_ref):
    # x_ref block: [TB, G*L*C]  (each row holds G flattened [L, C] samples)
    x = x_ref[...].astype(jnp.float32)

    # ---- temporal branch (mixes along seq_len; transpose folded into kron weights)
    h = jnp.dot(x.astype(jnp.bfloat16), w1_ref[...],
                preferred_element_type=jnp.float32) + b1_ref[...]
    h = jnp.maximum(h, 0.0)                                            # [TB, G*D*C] f32
    x = x + (jnp.dot(h.astype(jnp.bfloat16), w2_ref[...],
                     preferred_element_type=jnp.float32) + b2_ref[...])

    # ---- channel branch (mixes along enc_in)
    h = jnp.dot(x.astype(jnp.bfloat16), w3_ref[...],
                preferred_element_type=jnp.float32) + b3_ref[...]
    h = jnp.maximum(h, 0.0)                                            # [TB, G*L*D] f32
    x = x + (jnp.dot(h.astype(jnp.bfloat16), w4_ref[...],
                     preferred_element_type=jnp.float32) + b4_ref[...])

    o_ref[...] = x.astype(o_ref.dtype)


def _expand_params(params, L, C, G):
    """Fold the per-sample transpose and the G-sample row packing into
    block-diagonal (Kronecker) weights.  Weights are returned in bf16 (native
    MXU operand dtype); biases stay f32 for the VPU adds."""
    f32 = jnp.float32
    eye_c = jnp.eye(C, dtype=f32)
    eye_l = jnp.eye(L, dtype=f32)
    eye_g = jnp.eye(G, dtype=f32)

    w1b = jnp.kron(eye_g, jnp.kron(params["w1"].astype(f32), eye_c))   # [G*L*C, G*D*C]
    w2b = jnp.kron(eye_g, jnp.kron(params["w2"].astype(f32), eye_c))   # [G*D*C, G*L*C]
    w3b = jnp.kron(eye_g, jnp.kron(eye_l, params["w3"].astype(f32)))   # [G*L*C, G*L*D]
    w4b = jnp.kron(eye_g, jnp.kron(eye_l, params["w4"].astype(f32)))   # [G*L*D, G*L*C]

    b1b = jnp.tile(jnp.repeat(params["b1"].reshape(-1).astype(f32), C), G).reshape(1, -1)
    b2b = jnp.tile(jnp.repeat(params["b2"].reshape(-1).astype(f32), C), G).reshape(1, -1)
    b3b = jnp.tile(jnp.tile(params["b3"].reshape(-1).astype(f32), L), G).reshape(1, -1)
    b4b = jnp.tile(jnp.tile(params["b4"].reshape(-1).astype(f32), L), G).reshape(1, -1)

    bf16 = jnp.bfloat16
    return (w1b.astype(bf16), b1b, w2b.astype(bf16), b2b,
            w3b.astype(bf16), b3b, w4b.astype(bf16), b4b)


def resblock(x, params, *, max_block_rows=1024):
    """x: [B, L, C] float32. params: weights in [in, out] form, biases [1, out].

    max_block_rows: cap on packed rows (G samples each) per grid step.  1024
    rows = 4096 samples keeps the kernel's VMEM footprint ~14 MiB, safe on all
    generations including v7x (64 MiB physical VMEM)."""
    B, L, C = x.shape
    LC = L * C

    # Fold G samples per row -> lane-dense activations (last dim G*L*C).
    G = 4 if B % 4 == 0 else (2 if B % 2 == 0 else 1)
    rows = B // G
    row_w = G * LC

    w1b, b1b, w2b, b2b, w3b, b3b, w4b, b4b = _expand_params(params, L, C, G)

    # Pure reshape (row-major, no data movement / HBM round trip).
    x2 = x.reshape(rows, row_w)

    # Tile sizing: even tile count (>= 4 when possible) so v7x's two cores get
    # >= 2 pipeline steps each; row tile a multiple of 8 for sublane tiling.
    if rows <= 32:
        tb, nb = rows, 1                       # single block == full array dims
    else:
        nb = max(4, pl.cdiv(rows, max_block_rows))
        nb += nb % 2                           # even number of tiles
        tb = min(rows, ((pl.cdiv(rows, nb) + 7) // 8) * 8)
        nb = pl.cdiv(rows, tb)                 # Pallas masks the partial final block

    full = lambda a: pl.BlockSpec(a.shape, lambda i: (0,) * a.ndim)  # VMEM-resident

    flops = 2 * rows * (w1b.shape[0] * w1b.shape[1] + w2b.shape[0] * w2b.shape[1]
                        + w3b.shape[0] * w3b.shape[1] + w4b.shape[0] * w4b.shape[1])
    bytes_accessed = 2 * x2.size * 4 + sum(
        int(a.size) * a.dtype.itemsize
        for a in (w1b, b1b, w2b, b2b, w3b, b3b, w4b, b4b))

    out2 = pl.pallas_call(
        resblock_kernel,
        out_shape=jax.ShapeDtypeStruct((rows, row_w), x.dtype),
        grid_spec=pltpu.PrefetchScalarGridSpec(
            num_scalar_prefetch=0,
            grid=(nb,),
            in_specs=[
                pl.BlockSpec((tb, row_w), lambda i: (i, 0)),     # x batch tile
                full(w1b), full(b1b), full(w2b), full(b2b),
                full(w3b), full(b3b), full(w4b), full(b4b),
            ],
            out_specs=pl.BlockSpec((tb, row_w), lambda i: (i, 0)),
        ),
        compiler_params=pltpu.CompilerParams(
            dimension_semantics=("parallel",),        # shard tiles on v7x's 2 TCs
            vmem_limit_bytes=48 * 1024 * 1024),
        cost_estimate=pl.CostEstimate(flops=flops, transcendentals=0,
                                      bytes_accessed=bytes_accessed),
    )(x2, w1b, b1b, w2b, b2b, w3b, b3b, w4b, b4b)

    return out2.reshape(B, L, C)


def resblock_ref(x, p):
    """Pure-JAX f32 reference mirroring the PyTorch module (dropout = identity)."""
    xt = jnp.swapaxes(x, 1, 2)                                   # [B, C, L]
    t = jnp.maximum(xt @ p["w1"] + p["b1"], 0.0) @ p["w2"] + p["b2"]
    x = x + jnp.swapaxes(t, 1, 2)
    c = jnp.maximum(x @ p["w3"] + p["b3"], 0.0) @ p["w4"] + p["b4"]
    return x + c


if __name__ == "__main__":
    # Small config consistent with TSMixer: seq_len=8, enc_in=4, d_model=32
    B, L, C, D = 2, 8, 4, 32

    key = jax.random.PRNGKey(0)
    ks = jax.random.split(key, 10)
    x = jax.random.normal(ks[0], (B, L, C), dtype=jnp.float32)

    # Weights stored as [in_features, out_features] (torch W.T), biases as [1, out].
    scale = 0.1
    params = {
        "w1": scale * jax.random.normal(ks[1], (L, D), dtype=jnp.float32),
        "b1": scale * jax.random.normal(ks[2], (1, D), dtype=jnp.float32),
        "w2": scale * jax.random.normal(ks[3], (D, L), dtype=jnp.float32),
        "b2": scale * jax.random.normal(ks[4], (1, L), dtype=jnp.float32),
        "w3": scale * jax.random.normal(ks[5], (C, D), dtype=jnp.float32),
        "b3": scale * jax.random.normal(ks[6], (1, D), dtype=jnp.float32),
        "w4": scale * jax.random.normal(ks[7], (D, C), dtype=jnp.float32),
        "b4": scale * jax.random.normal(ks[8], (1, C), dtype=jnp.float32),
    }

    # bf16 matmul operands with f32 accumulation -> looser tolerance vs f32 ref.
    ATOL = RTOL = 3e-2

    # Small-shape check (single block, G=2 fallback).
    out = jax.block_until_ready(resblock(x, params))
    ref = resblock_ref(x, params)
    assert out.shape == (B, L, C)
    assert jnp.allclose(out, ref, atol=ATOL, rtol=RTOL), "mismatch vs reference"

    # Larger batch exercising G=4 lane-dense folding, multi-tile grid and the
    # partial final block (625 rows -> 4 tiles of 160 rows).
    Bbig = 2500
    xb = jax.random.normal(ks[9], (Bbig, L, C), dtype=jnp.float32)
    outb = jax.block_until_ready(resblock(xb, params, max_block_rows=1024))
    refb = resblock_ref(xb, params)
    assert outb.shape == (Bbig, L, C)
    assert jnp.allclose(outb, refb, atol=ATOL, rtol=RTOL), "mismatch vs reference (big batch)"

    print("KERNEL_OK")
</pallas_src>

<mosaic_0001>
module attributes {stable_mosaic.version = 11 : i64} {
  func.func @resblock_kernel(%arg0: i32, %arg1: memref<1x64xf32, #tpu.memory_space<vmem>>, %arg2: memref<64x256xbf16, #tpu.memory_space<vmem>>, %arg3: memref<1x256xf32, #tpu.memory_space<vmem>>, %arg4: memref<256x64xbf16, #tpu.memory_space<vmem>>, %arg5: memref<1x64xf32, #tpu.memory_space<vmem>>, %arg6: memref<64x512xbf16, #tpu.memory_space<vmem>>, %arg7: memref<1x512xf32, #tpu.memory_space<vmem>>, %arg8: memref<512x64xbf16, #tpu.memory_space<vmem>>, %arg9: memref<1x64xf32, #tpu.memory_space<vmem>>, %arg10: memref<1x64xf32, #tpu.memory_space<vmem>>) attributes {dimension_semantics = [#tpu.dimension_semantics<parallel>], iteration_bounds = array<i64: 1>, scalar_prefetch = 0 : i64, scratch_operands = 0 : i64, tpu.core_type = #tpu.core_type<tc>, window_params = [{transform_indices = @transform_0, window_bounds = array<i64: 1, 64>}, {pipeline_mode = #tpu.pipeline_mode<synchronous>, transform_indices = @transform_1, window_bounds = array<i64: 64, 256>}, {pipeline_mode = #tpu.pipeline_mode<synchronous>, transform_indices = @transform_2, window_bounds = array<i64: 1, 256>}, {pipeline_mode = #tpu.pipeline_mode<synchronous>, transform_indices = @transform_3, window_bounds = array<i64: 256, 64>}, {pipeline_mode = #tpu.pipeline_mode<synchronous>, transform_indices = @transform_4, window_bounds = array<i64: 1, 64>}, {pipeline_mode = #tpu.pipeline_mode<synchronous>, transform_indices = @transform_5, window_bounds = array<i64: 64, 512>}, {pipeline_mode = #tpu.pipeline_mode<synchronous>, transform_indices = @transform_6, window_bounds = array<i64: 1, 512>}, {pipeline_mode = #tpu.pipeline_mode<synchronous>, transform_indices = @transform_7, window_bounds = array<i64: 512, 64>}, {pipeline_mode = #tpu.pipeline_mode<synchronous>, transform_indices = @transform_8, window_bounds = array<i64: 1, 64>}, {transform_indices = @transform_9, window_bounds = array<i64: 1, 64>}]} {
    %c0 = arith.constant 0 : index
    %c0_0 = arith.constant 0 : index
    %0 = vector.load %arg1[%c0, %c0_0] : memref<1x64xf32, #tpu.memory_space<vmem>>, vector<1x64xf32>
    %1 = arith.truncf %0 : vector<1x64xf32> to vector<1x64xbf16>
    %c0_1 = arith.constant 0 : index
    %c0_2 = arith.constant 0 : index
    %2 = vector.load %arg2[%c0_1, %c0_2] : memref<64x256xbf16, #tpu.memory_space<vmem>>, vector<64x256xbf16>
    %cst = arith.constant dense<0.000000e+00> : vector<1x256xf32>
    %3 = tpu.matmul %1, %2, %cst {dimension_numbers = #tpu.dot_dimension_numbers<[1], [0], [0], [1], [0, 0, 1, 1], [], []>} : vector<1x64xbf16>, vector<64x256xbf16>, vector<1x256xf32> -> vector<1x256xf32>
    %c0_3 = arith.constant 0 : index
    %c0_4 = arith.constant 0 : index
    %4 = vector.load %arg3[%c0_3, %c0_4] : memref<1x256xf32, #tpu.memory_space<vmem>>, vector<1x256xf32>
    %5 = arith.addf %3, %4 : vector<1x256xf32>
    %cst_5 = arith.constant 0.000000e+00 : f32
    %6 = vector.broadcast %cst_5 : f32 to vector<1x256xf32>
    %7 = arith.maximumf %5, %6 : vector<1x256xf32>
    %8 = arith.truncf %7 : vector<1x256xf32> to vector<1x256xbf16>
    %c0_6 = arith.constant 0 : index
    %c0_7 = arith.constant 0 : index
    %9 = vector.load %arg4[%c0_6, %c0_7] : memref<256x64xbf16, #tpu.memory_space<vmem>>, vector<256x64xbf16>
    %cst_8 = arith.constant dense<0.000000e+00> : vector<1x64xf32>
    %10 = tpu.matmul %8, %9, %cst_8 {dimension_numbers = #tpu.dot_dimension_numbers<[1], [0], [0], [1], [0, 0, 1, 1], [], []>} : vector<1x256xbf16>, vector<256x64xbf16>, vector<1x64xf32> -> vector<1x64xf32>
    %c0_9 = arith.constant 0 : index
    %c0_10 = arith.constant 0 : index
    %11 = vector.load %arg5[%c0_9, %c0_10] : memref<1x64xf32, #tpu.memory_space<vmem>>, vector<1x64xf32>
    %12 = arith.addf %10, %11 : vector<1x64xf32>
    %13 = arith.addf %0, %12 : vector<1x64xf32>
    %14 = arith.truncf %13 : vector<1x64xf32> to vector<1x64xbf16>
    %c0_11 = arith.constant 0 : index
    %c0_12 = arith.constant 0 : index
    %15 = vector.load %arg6[%c0_11, %c0_12] : memref<64x512xbf16, #tpu.memory_space<vmem>>, vector<64x512xbf16>
    %cst_13 = arith.constant dense<0.000000e+00> : vector<1x512xf32>
    %16 = tpu.matmul %14, %15, %cst_13 {dimension_numbers = #tpu.dot_dimension_numbers<[1], [0], [0], [1], [0, 0, 1, 1], [], []>} : vector<1x64xbf16>, vector<64x512xbf16>, vector<1x512xf32> -> vector<1x512xf32>
    %c0_14 = arith.constant 0 : index
    %c0_15 = arith.constant 0 : index
    %17 = vector.load %arg7[%c0_14, %c0_15] : memref<1x512xf32, #tpu.memory_space<vmem>>, vector<1x512xf32>
    %18 = arith.addf %16, %17 : vector<1x512xf32>
    %cst_16 = arith.constant 0.000000e+00 : f32
    %19 = vector.broadcast %cst_16 : f32 to vector<1x512xf32>
    %20 = arith.maximumf %18, %19 : vector<1x512xf32>
    %21 = arith.truncf %20 : vector<1x512xf32> to vector<1x512xbf16>
    %c0_17 = arith.constant 0 : index
    %c0_18 = arith.constant 0 : index
    %22 = vector.load %arg8[%c0_17, %c0_18] : memref<512x64xbf16, #tpu.memory_space<vmem>>, vector<512x64xbf16>
    %cst_19 = arith.constant dense<0.000000e+00> : vector<1x64xf32>
    %23 = tpu.matmul %21, %22, %cst_19 {dimension_numbers = #tpu.dot_dimension_numbers<[1], [0], [0], [1], [0, 0, 1, 1], [], []>} : vector<1x512xbf16>, vector<512x64xbf16>, vector<1x64xf32> -> vector<1x64xf32>
    %c0_20 = arith.constant 0 : index
    %c0_21 = arith.constant 0 : index
    %24 = vector.load %arg9[%c0_20, %c0_21] : memref<1x64xf32, #tpu.memory_space<vmem>>, vector<1x64xf32>
    %25 = arith.addf %23, %24 : vector<1x64xf32>
    %26 = arith.addf %13, %25 : vector<1x64xf32>
    %c0_22 = arith.constant 0 : index
    %c0_23 = arith.constant 0 : index
    %27 = vector.load %arg10[%c0_22, %c0_23] : memref<1x64xf32, #tpu.memory_space<vmem>>, vector<1x64xf32>
    tpu.vector_store %arg10[%c0_22, %c0_23], %26 {strides = array<i32>} : memref<1x64xf32, #tpu.memory_space<vmem>>, vector<1x64xf32>,
    return
  }
  func.func @transform_0(%arg0: i32) -> (i32, i32) {
    %c0_i32 = arith.constant 0 : i32
    %c0_i32_0 = arith.constant 0 : i32
    return %arg0, %c0_i32 : i32, i32
  }
  func.func @transform_1(%arg0: i32) -> (i32, i32) {
    %c0_i32 = arith.constant 0 : i32
    %c0_i32_0 = arith.constant 0 : i32
    %c0_i32_1 = arith.constant 0 : i32
    return %c0_i32, %c0_i32_0 : i32, i32
  }
  func.func @transform_2(%arg0: i32) -> (i32, i32) {
    %c0_i32 = arith.constant 0 : i32
    %c0_i32_0 = arith.constant 0 : i32
    %c0_i32_1 = arith.constant 0 : i32
    return %c0_i32, %c0_i32_0 : i32, i32
  }
  func.func @transform_3(%arg0: i32) -> (i32, i32) {
    %c0_i32 = arith.constant 0 : i32
    %c0_i32_0 = arith.constant 0 : i32
    %c0_i32_1 = arith.constant 0 : i32
    return %c0_i32, %c0_i32_0 : i32, i32
  }
  func.func @transform_4(%arg0: i32) -> (i32, i32) {
    %c0_i32 = arith.constant 0 : i32
    %c0_i32_0 = arith.constant 0 : i32
    %c0_i32_1 = arith.constant 0 : i32
    return %c0_i32, %c0_i32_0 : i32, i32
  }
  func.func @transform_5(%arg0: i32) -> (i32, i32) {
    %c0_i32 = arith.constant 0 : i32
    %c0_i32_0 = arith.constant 0 : i32
    %c0_i32_1 = arith.constant 0 : i32
    return %c0_i32, %c0_i32_0 : i32, i32
  }
  func.func @transform_6(%arg0: i32) -> (i32, i32) {
    %c0_i32 = arith.constant 0 : i32
    %c0_i32_0 = arith.constant 0 : i32
    %c0_i32_1 = arith.constant 0 : i32
    return %c0_i32, %c0_i32_0 : i32, i32
  }
  func.func @transform_7(%arg0: i32) -> (i32, i32) {
    %c0_i32 = arith.constant 0 : i32
    %c0_i32_0 = arith.constant 0 : i32
    %c0_i32_1 = arith.constant 0 : i32
    return %c0_i32, %c0_i32_0 : i32, i32
  }
  func.func @transform_8(%arg0: i32) -> (i32, i32) {
    %c0_i32 = arith.constant 0 : i32
    %c0_i32_0 = arith.constant 0 : i32
    %c0_i32_1 = arith.constant 0 : i32
    return %c0_i32, %c0_i32_0 : i32, i32
  }
  func.func @transform_9(%arg0: i32) -> (i32, i32) {
    %c0_i32 = arith.constant 0 : i32
    %c0_i32_0 = arith.constant 0 : i32
    return %arg0, %c0_i32 : i32, i32
  }
}

</mosaic_0001>

<llo_original>
// kernel: tpu_custom_call.1
$region0: #{tpu_custom_call.1}
  #allocation0 [shape = 'u32[]', space=smem, size = 0x4, offset = 0x4, fixed_abs, tag = 'smem constant byte address 0x4 - core index']
  #allocation1 [shape = 'u32[144,128]{1,0:T(1,128)}', space=vmem, size = 0x12000, scoped, tag = 'internal scratch']
  %s0 = inlined_call_operand.vmem [shape: f32[1,64], index: 0, kind: input, shape index: {}]
  %s1 = inlined_call_operand.vmem [shape: bf16[64,256], index: 1, kind: input, shape index: {}]
  %s2 = inlined_call_operand.vmem [shape: f32[1,256], index: 2, kind: input, shape index: {}]
  %s3 = inlined_call_operand.vmem [shape: bf16[256,64], index: 3, kind: input, shape index: {}]
  %s4 = inlined_call_operand.vmem [shape: f32[1,64], index: 4, kind: input, shape index: {}]
  %s5 = inlined_call_operand.vmem [shape: bf16[64,512], index: 5, kind: input, shape index: {}]
  %s6 = inlined_call_operand.vmem [shape: f32[1,512], index: 6, kind: input, shape index: {}]
  %s7 = inlined_call_operand.vmem [shape: bf16[512,64], index: 7, kind: input, shape index: {}]
  %s8 = inlined_call_operand.vmem [shape: f32[1,64], index: 8, kind: input, shape index: {}]
  %s9 = inlined_call_operand.hbm [shape: f32[1,64], index: 9, kind: output, shape index: {}]
  %s10 = sld [smem:[#allocation0]]
  $region46: #{tpu_custom_call.1} parent=0
    _
  %s12 = ssub.s32 1, %s10
  %s13 = scalar_select 0, %s12, %s10
  $region1: #{tpu_custom_call.1} parent=0
    #allocation2 [shape = 'u8[512]{0}', space=vmem, size = 0x400, scoped, tag = 'output window, operand 0, single buffered']
    #allocation3 [shape = 's32[1]{0}', space=sflag, size = 0x4, scoped, tag = 'scoped memory for tpu_custom_call.1']
    %14 = vsyncpa [#allocation3], 0
    // Predicated region
    $region2: #{tpu_custom_call.1} parent=1 // pred_check
      _
    $region3: #{tpu_custom_call.1} parent=1 // pred_check_branch
      %16 = sbr.rel (0) target = $region5
    $region4: #{tpu_custom_call.1} parent=1 // pred_region
      _
    $region5: #{tpu_custom_call.1} parent=1 // pred_fallthru
      _
    // Predicated region
    $region6: #{tpu_custom_call.1} parent=1 // pred_check
      _
    $region7: #{tpu_custom_call.1} parent=1 // pred_check_branch
      %18 = sbr.rel (0) target = $region9
    $region8: #{tpu_custom_call.1} parent=1 // pred_region
      _
    $region9: #{tpu_custom_call.1} parent=1 // pred_fallthru
      _
    // Predicated region
    $region10: #{tpu_custom_call.1} parent=1 // pred_check
      _
    $region11: #{tpu_custom_call.1} parent=1 // pred_check_branch
      %20 = sbr.rel (0) target = $region13
    $region12: #{tpu_custom_call.1} parent=1 // pred_region
      _
    $region13: #{tpu_custom_call.1} parent=1 // pred_fallthru
      _
    // Predicated region
    $region14: #{tpu_custom_call.1} parent=1 // pred_check
      _
    $region15: #{tpu_custom_call.1} parent=1 // pred_check_branch
      %22 = sbr.rel (0) target = $region17
    $region16: #{tpu_custom_call.1} parent=1 // pred_region
      _
    $region17: #{tpu_custom_call.1} parent=1 // pred_fallthru
      _
    // Predicated region
    $region18: #{tpu_custom_call.1} parent=1 // pred_check
      _
    $region19: #{tpu_custom_call.1} parent=1 // pred_check_branch
      %24 = sbr.rel (0) target = $region21
    $region20: #{tpu_custom_call.1} parent=1 // pred_region
      _
    $region21: #{tpu_custom_call.1} parent=1 // pred_fallthru
      _
    // Predicated region
    $region22: #{tpu_custom_call.1} parent=1 // pred_check
      _
    $region23: #{tpu_custom_call.1} parent=1 // pred_check_branch
      %26 = sbr.rel (0) target = $region25
    $region24: #{tpu_custom_call.1} parent=1 // pred_region
      _
    $region25: #{tpu_custom_call.1} parent=1 // pred_fallthru
      _
    // Predicated region
    $region26: #{tpu_custom_call.1} parent=1 // pred_check
      _
    $region27: #{tpu_custom_call.1} parent=1 // pred_check_branch
      %28 = sbr.rel (0) target = $region29
    $region28: #{tpu_custom_call.1} parent=1 // pred_region
      _
    $region29: #{tpu_custom_call.1} parent=1 // pred_fallthru
      _
    // Predicated region
    $region30: #{tpu_custom_call.1} parent=1 // pred_check
      _
    $region31: #{tpu_custom_call.1} parent=1 // pred_check_branch
      %30 = sbr.rel (0) target = $region33
    $region32: #{tpu_custom_call.1} parent=1 // pred_region
      _
    $region33: #{tpu_custom_call.1} parent=1 // pred_fallthru
      _
    // Predicated region
    $region34: #{tpu_custom_call.1} parent=1 // pred_check
      _
    $region35: #{tpu_custom_call.1} parent=1 // pred_check_branch
      %32 = sbr.rel (0) target = $region37
    $region36: #{tpu_custom_call.1} parent=1 // pred_region
      _
    $region37: #{tpu_custom_call.1} parent=1 // pred_fallthru
      _
    %v34 = vld [vmem:[%s0] sm:$0x1]
    %v35 = vpack.c.bf16 %v34, %v34
    %v36 = vld [vmem:[%s1] sm:$0xff]
    %v37 = vld [vmem:[%s1 + $0x8] sm:$0xff]
    %v38 = vld [vmem:[%s1 + $0x10] sm:$0xff]
    %v39 = vld [vmem:[%s1 + $0x18] sm:$0xff]
    %v40 = vld [vmem:[%s1 + $0x20] sm:$0xff]
    %v41 = vld [vmem:[%s1 + $0x28] sm:$0xff]
    %v42 = vld [vmem:[%s1 + $0x30] sm:$0xff]
    %v43 = vld [vmem:[%s1 + $0x38] sm:$0xff]
    %v44 = vld [vmem:[%s2] sm:$0x3]
    %v53 = vunpack.c.l.b16 %v36
    %v54 = vunpack.c.h.b16 %v36
    %v55 = vunpack.c.l.b16 %v37
    %v56 = vunpack.c.h.b16 %v37
    %v57 = vunpack.c.l.b16 %v38
    %v58 = vunpack.c.h.b16 %v38
    %v59 = vunpack.c.l.b16 %v39
    %v60 = vunpack.c.h.b16 %v39
    %v61 = vunpack.c.l.b16 %v40
    %v62 = vunpack.c.h.b16 %v40
    %v63 = vunpack.c.l.b16 %v41
    %v64 = vunpack.c.h.b16 %v41
    %v65 = vunpack.c.l.b16 %v42
    %v66 = vunpack.c.h.b16 %v42
    %v67 = vunpack.c.l.b16 %v43
    %v68 = vunpack.c.h.b16 %v43
    %v69 = vpack.c.b16 %v55, %v53
    %v70 = vpack.c.b16 %v56, %v54
    %v71 = vpack.c.b16 %v59, %v57
    %v72 = vpack.c.b16 %v60, %v58
    %v73 = vpack.c.b16 %v63, %v61
    %v74 = vpack.c.b16 %v64, %v62
    %v75 = vpack.c.b16 %v67, %v65
    %v76 = vpack.c.b16 %v68, %v66
    %v86 = vlaneseq
    %v87 = vshrl.u32 %v86, 7
    %v88 = vsub.s32 0, %v87
    %v89 = vrot.slane %v44, %v88
    %v90 = vlaneseq
    %v91 = vshrl.u32 %v90, 7
    %v92 = vsub.s32 1, %v91
    %v93 = vrot.slane %v44, %v92
    %vm96 = vcmask 523264
    %v98 = vsel %vm96, %v35, 0
    %100 = vmatprep.subr.bf16.mxu0 %v70
    %101 = vmatpush1.bf16.msra.mxu0 %v69
    %102 = vmatprep.subr.bf16.mxu0 %v72
    %103 = vmatpush1.bf16.msra.mxu0 %v71
    %104 = vmatprep.subr.bf16.mxu0 %v74
    %105 = vmatpush1.bf16.msra.mxu0 %v73
    %106 = vmatprep.subr.bf16.mxu0 %v76
    %107 = vmatpush1.bf16.msra.mxu0 %v75
    %108 = vmatprep.subr.bf16.mxu0 0
    %109 = vmatpush1.bf16.msra.mxu0 0
    %110 = vmatprep.subr.bf16.mxu0 0
    %111 = vmatpush1.bf16.msra.mxu0 0
    %112 = vmatprep.subr.bf16.mxu0 0
    %113 = vmatpush1.bf16.msra.mxu0 0
    %114 = vmatprep.subr.bf16.mxu0 0
    %115 = vmatpush1.bf16.msra.mxu0 0
    %116 = vmatprep.subr.bf16.mxu0 0
    %117 = vmatpush1.bf16.msra.mxu0 0
    %118 = vmatprep.subr.bf16.mxu0 0
    %119 = vmatpush1.bf16.msra.mxu0 0
    %120 = vmatprep.subr.bf16.mxu0 0
    %121 = vmatpush1.bf16.msra.mxu0 0
    %122 = vmatprep.subr.bf16.mxu0 0
    %123 = vmatpush1.bf16.msra.mxu0 0
    %124 = vmatprep.subr.bf16.mxu0 0
    %125 = vmatpush1.bf16.msra.mxu0 0
    %126 = vmatprep.subr.bf16.mxu0 0
    %127 = vmatpush1.bf16.msra.mxu0 0
    %128 = vmatprep.subr.bf16.mxu0 0
    %129 = vmatpush1.bf16.msra.mxu0 0
    %130 = vmatprep.subr.bf16.mxu0 0
    %131 = vmatpush1.bf16.msra.mxu0 0
    %132 = vmatprep.mubr.bf16.mxu0 0
    %133 = vmatmul.mubr.bf16.gmra.mrb[0].mxu0 %v98
    %v134 = vpop.f32.mrb[0].mxu0
    %v135 = vadd.f32 %v89, %v134
    %v136 = vpop.f32.mrb[0].mxu0
    %v137 = vadd.f32 %v93, %v136
    %v138 = vpop.f32.mrb[0].mxu0
    %v139 = vpop.f32.mrb[0].mxu0
    %140 = vdwg.mxu0
    %v141 = vmax.f32 %v135, 0.0
    %v142 = vmax.f32 %v137, 0.0
    %v143 = vpack.c.bf16 %v141, %v141
    %v144 = vpack.c.bf16 %v142, %v142
    %v145 = vld [vmem:[%s3] sm:$0xf]
    %v146 = vld [vmem:[%s3 + $0x4] sm:$0xf]
    %v147 = vld [vmem:[%s3 + $0x8] sm:$0xf]
    %v148 = vld [vmem:[%s3 + $0xc] sm:$0xf]
    %v149 = vld [vmem:[%s3 + $0x10] sm:$0xf]
    %v150 = vld [vmem:[%s3 + $0x14] sm:$0xf]
    %v151 = vld [vmem:[%s3 + $0x18] sm:$0xf]
    %v152 = vld [vmem:[%s3 + $0x1c] sm:$0xf]
    %v153 = vld [vmem:[%s3 + $0x20] sm:$0xf]
    %v154 = vld [vmem:[%s3 + $0x24] sm:$0xf]
    %v155 = vld [vmem:[%s3 + $0x28] sm:$0xf]
    %v156 = vld [vmem:[%s3 + $0x2c] sm:$0xf]
    %v157 = vld [vmem:[%s3 + $0x30] sm:$0xf]
    %v158 = vld [vmem:[%s3 + $0x34] sm:$0xf]
    %v159 = vld [vmem:[%s3 + $0x38] sm:$0xf]
    %v160 = vld [vmem:[%s3 + $0x3c] sm:$0xf]
    %v161 = vld [vmem:[%s3 + $0x40] sm:$0xf]
    %v162 = vld [vmem:[%s3 + $0x44] sm:$0xf]
    %v163 = vld [vmem:[%s3 + $0x48] sm:$0xf]
    %v164 = vld [vmem:[%s3 + $0x4c] sm:$0xf]
    %v165 = vld [vmem:[%s3 + $0x50] sm:$0xf]
    %v166 = vld [vmem:[%s3 + $0x54] sm:$0xf]
    %v167 = vld [vmem:[%s3 + $0x58] sm:$0xf]
    %v168 = vld [vmem:[%s3 + $0x5c] sm:$0xf]
    %v169 = vld [vmem:[%s3 + $0x60] sm:$0xf]
    %v170 = vld [vmem:[%s3 + $0x64] sm:$0xf]
    %v171 = vld [vmem:[%s3 + $0x68] sm:$0xf]
    %v172 = vld [vmem:[%s3 + $0x6c] sm:$0xf]
    %v173 = vld [vmem:[%s3 + $0x70] sm:$0xf]
    %v174 = vld [vmem:[%s3 + $0x74] sm:$0xf]
    %v175 = vld [vmem:[%s3 + $0x78] sm:$0xf]
    %v176 = vld [vmem:[%s3 + $0x7c] sm:$0xf]
    %v177 = vld [vmem:[%s4] sm:$0x1]
    %v210 = vunpack.c.l.b16 %v145
    %v211 = vunpack.c.l.b16 %v146
    %v212 = vunpack.c.l.b16 %v147
    %v213 = vunpack.c.l.b16 %v148
    %v214 = vunpack.c.l.b16 %v149
    %v215 = vunpack.c.l.b16 %v150
    %v216 = vunpack.c.l.b16 %v151
    %v217 = vunpack.c.l.b16 %v152
    %v218 = vunpack.c.l.b16 %v153
    %v219 = vunpack.c.l.b16 %v154
    %v220 = vunpack.c.l.b16 %v155
    %v221 = vunpack.c.l.b16 %v156
    %v222 = vunpack.c.l.b16 %v157
    %v223 = vunpack.c.l.b16 %v158
    %v224 = vunpack.c.l.b16 %v159
    %v225 = vunpack.c.l.b16 %v160
    %v226 = vunpack.c.l.b16 %v161
    %v227 = vunpack.c.l.b16 %v162
    %v228 = vunpack.c.l.b16 %v163
    %v229 = vunpack.c.l.b16 %v164
    %v230 = vunpack.c.l.b16 %v165
    %v231 = vunpack.c.l.b16 %v166
    %v232 = vunpack.c.l.b16 %v167
    %v233 = vunpack.c.l.b16 %v168
    %v234 = vunpack.c.l.b16 %v169
    %v235 = vunpack.c.l.b16 %v170
    %v236 = vunpack.c.l.b16 %v171
    %v237 = vunpack.c.l.b16 %v172
    %v238 = vunpack.c.l.b16 %v173
    %v239 = vunpack.c.l.b16 %v174
    %v240 = vunpack.c.l.b16 %v175
    %v241 = vunpack.c.l.b16 %v176
    %v242 = vpack.c.b16 %v211, %v210
    %v243 = vpack.c.b16 %v213, %v212
    %v244 = vpack.c.b16 %v215, %v214
    %v245 = vpack.c.b16 %v217, %v216
    %v246 = vpack.c.b16 %v219, %v218
    %v247 = vpack.c.b16 %v221, %v220
    %v248 = vpack.c.b16 %v223, %v222
    %v249 = vpack.c.b16 %v225, %v224
    %v250 = vpack.c.b16 %v227, %v226
    %v251 = vpack.c.b16 %v229, %v228
    %v252 = vpack.c.b16 %v231, %v230
    %v253 = vpack.c.b16 %v233, %v232
    %v254 = vpack.c.b16 %v235, %v234
    %v255 = vpack.c.b16 %v237, %v236
    %v256 = vpack.c.b16 %v239, %v238
    %v257 = vpack.c.b16 %v241, %v240
    %274 = vmatprep.subr.bf16.mxu0 0
    %275 = vmatpush1.bf16.msra.mxu0 %v242
    %276 = vmatprep.subr.bf16.mxu0 0
    %277 = vmatpush1.bf16.msra.mxu0 %v243
    %278 = vmatprep.subr.bf16.mxu0 0
    %279 = vmatpush1.bf16.msra.mxu0 %v244
    %280 = vmatprep.subr.bf16.mxu0 0
    %281 = vmatpush1.bf16.msra.mxu0 %v245
    %282 = vmatprep.subr.bf16.mxu0 0
    %283 = vmatpush1.bf16.msra.mxu0 %v246
    %284 = vmatprep.subr.bf16.mxu0 0
    %285 = vmatpush1.bf16.msra.mxu0 %v247
    %286 = vmatprep.subr.bf16.mxu0 0
    %287 = vmatpush1.bf16.msra.mxu0 %v248
    %288 = vmatprep.subr.bf16.mxu0 0
    %289 = vmatpush1.bf16.msra.mxu0 %v249
    %290 = vmatprep.subr.bf16.mxu0 0
    %291 = vmatpush1.bf16.msra.mxu0 %v250
    %292 = vmatprep.subr.bf16.mxu0 0
    %293 = vmatpush1.bf16.msra.mxu0 %v251
    %294 = vmatprep.subr.bf16.mxu0 0
    %295 = vmatpush1.bf16.msra.mxu0 %v252
    %296 = vmatprep.subr.bf16.mxu0 0
    %297 = vmatpush1.bf16.msra.mxu0 %v253
    %298 = vmatprep.subr.bf16.mxu0 0
    %299 = vmatpush1.bf16.msra.mxu0 %v254
    %300 = vmatprep.subr.bf16.mxu0 0
    %301 = vmatpush1.bf16.msra.mxu0 %v255
    %302 = vmatprep.subr.bf16.mxu0 0
    %303 = vmatpush1.bf16.msra.mxu0 %v256
    %304 = vmatprep.subr.bf16.mxu0 0
    %305 = vmatpush1.bf16.msra.mxu0 %v257
    %306 = vmatprep.mubr.bf16.mxu0 %v144
    %307 = vmatmul.mubr.bf16.gmra.mrb[0].mxu0 %v143
    %v308 = vpop.f32.mrb[0].mxu0
    %v309 = vadd.f32 %v177, %v308
    %v310 = vpop.f32.mrb[0].mxu0
    %v311 = vpop.f32.mrb[0].mxu0
    %v312 = vpop.f32.mrb[0].mxu0
    %313 = vdwg.mxu0
    %v314 = vadd.f32 %v34, %v309
    %v315 = vpack.c.bf16 %v314, %v314
    %v316 = vld [vmem:[%s5] sm:$0xff]
    %v317 = vld [vmem:[%s5 + $0x8] sm:$0xff]
    %v318 = vld [vmem:[%s5 + $0x10] sm:$0xff]
    %v319 = vld [vmem:[%s5 + $0x18] sm:$0xff]
    %v320 = vld [vmem:[%s5 + $0x20] sm:$0xff]
    %v321 = vld [vmem:[%s5 + $0x28] sm:$0xff]
    %v322 = vld [vmem:[%s5 + $0x30] sm:$0xff]
    %v323 = vld [vmem:[%s5 + $0x38] sm:$0xff]
    %v324 = vld [vmem:[%s5 + $0x40] sm:$0xff]
    %v325 = vld [vmem:[%s5 + $0x48] sm:$0xff]
    %v326 = vld [vmem:[%s5 + $0x50] sm:$0xff]
    %v327 = vld [vmem:[%s5 + $0x58] sm:$0xff]
    %v328 = vld [vmem:[%s5 + $0x60] sm:$0xff]
    %v329 = vld [vmem:[%s5 + $0x68] sm:$0xff]
    %v330 = vld [vmem:[%s5 + $0x70] sm:$0xff]
    %v331 = vld [vmem:[%s5 + $0x78] sm:$0xff]
    %v332 = vld [vmem:[%s6] sm:$0xf]
    %v349 = vunpack.c.l.b16 %v316
    %v350 = vunpack.c.h.b16 %v316
    %v351 = vunpack.c.l.b16 %v317
    %v352 = vunpack.c.h.b16 %v317
    %v353 = vunpack.c.l.b16 %v318
    %v354 = vunpack.c.h.b16 %v318
    %v355 = vunpack.c.l.b16 %v319
    %v356 = vunpack.c.h.b16 %v319
    %v357 = vunpack.c.l.b16 %v320
    %v358 = vunpack.c.h.b16 %v320
    %v359 = vunpack.c.l.b16 %v321
    %v360 = vunpack.c.h.b16 %v321
    %v361 = vunpack.c.l.b16 %v322
    %v362 = vunpack.c.h.b16 %v322
    %v363 = vunpack.c.l.b16 %v323
    %v364 = vunpack.c.h.b16 %v323
    %v365 = vunpack.c.l.b16 %v324
    %v366 = vunpack.c.h.b16 %v324
    %v367 = vunpack.c.l.b16 %v325
    %v368 = vunpack.c.h.b16 %v325
    %v369 = vunpack.c.l.b16 %v326
    %v370 = vunpack.c.h.b16 %v326
    %v371 = vunpack.c.l.b16 %v327
    %v372 = vunpack.c.h.b16 %v327
    %v373 = vunpack.c.l.b16 %v328
    %v374 = vunpack.c.h.b16 %v328
    %v375 = vunpack.c.l.b16 %v329
    %v376 = vunpack.c.h.b16 %v329
    %v377 = vunpack.c.l.b16 %v330
    %v378 = vunpack.c.h.b16 %v330
    %v379 = vunpack.c.l.b16 %v331
    %v380 = vunpack.c.h.b16 %v331
    %v381 = vpack.c.b16 %v353, %v349
    %v382 = vpack.c.b16 %v354, %v350
    %v383 = vpack.c.b16 %v355, %v351
    %v384 = vpack.c.b16 %v356, %v352
    %v385 = vpack.c.b16 %v361, %v357
    %v386 = vpack.c.b16 %v362, %v358
    %v387 = vpack.c.b16 %v363, %v359
    %v388 = vpack.c.b16 %v364, %v360
    %v389 = vpack.c.b16 %v369, %v365
    %v390 = vpack.c.b16 %v370, %v366
    %v391 = vpack.c.b16 %v371, %v367
    %v392 = vpack.c.b16 %v372, %v368
    %v393 = vpack.c.b16 %v377, %v373
    %v394 = vpack.c.b16 %v378, %v374
    %v395 = vpack.c.b16 %v379, %v375
    %v396 = vpack.c.b16 %v380, %v376
    %v414 = vlaneseq
    %v415 = vshrl.u32 %v414, 7
    %v416 = vsub.s32 0, %v415
    %v417 = vrot.slane %v332, %v416
    %v418 = vlaneseq
    %v419 = vshrl.u32 %v418, 7
    %v420 = vsub.s32 1, %v419
    %v421 = vrot.slane %v332, %v420
    %v422 = vlaneseq
    %v423 = vshrl.u32 %v422, 7
    %v424 = vsub.s32 2, %v423
    %v425 = vrot.slane %v332, %v424
    %v426 = vlaneseq
    %v427 = vshrl.u32 %v426, 7
    %v428 = vsub.s32 3, %v427
    %v429 = vrot.slane %v332, %v428
    %v435 = vsel %vm96, %v315, 0
    %437 = vmatprep.subr.bf16.mxu0 %v382
    %438 = vmatpush1.bf16.msra.mxu0 %v381
    %439 = vmatprep.subr.bf16.mxu0 %v386
    %440 = vmatpush1.bf16.msra.mxu0 %v385
    %441 = vmatprep.subr.bf16.mxu0 %v390
    %442 = vmatpush1.bf16.msra.mxu0 %v389
    %443 = vmatprep.subr.bf16.mxu0 %v394
    %444 = vmatpush1.bf16.msra.mxu0 %v393
    %445 = vmatprep.subr.bf16.mxu0 0
    %446 = vmatpush1.bf16.msra.mxu0 0
    %447 = vmatprep.subr.bf16.mxu0 0
    %448 = vmatpush1.bf16.msra.mxu0 0
    %449 = vmatprep.subr.bf16.mxu0 0
    %450 = vmatpush1.bf16.msra.mxu0 0
    %451 = vmatprep.subr.bf16.mxu0 0
    %452 = vmatpush1.bf16.msra.mxu0 0
    %453 = vmatprep.subr.bf16.mxu0 0
    %454 = vmatpush1.bf16.msra.mxu0 0
    %455 = vmatprep.subr.bf16.mxu0 0
    %456 = vmatpush1.bf16.msra.mxu0 0
    %457 = vmatprep.subr.bf16.mxu0 0
    %458 = vmatpush1.bf16.msra.mxu0 0
    %459 = vmatprep.subr.bf16.mxu0 0
    %460 = vmatpush1.bf16.msra.mxu0 0
    %461 = vmatprep.subr.bf16.mxu0 0
    %462 = vmatpush1.bf16.msra.mxu0 0
    %463 = vmatprep.subr.bf16.mxu0 0
    %464 = vmatpush1.bf16.msra.mxu0 0
    %465 = vmatprep.subr.bf16.mxu0 0
    %466 = vmatpush1.bf16.msra.mxu0 0
    %467 = vmatprep.subr.bf16.mxu0 0
    %468 = vmatpush1.bf16.msra.mxu0 0
    %469 = vmatprep.mubr.bf16.mxu0 0
    %470 = vmatmul.mubr.bf16.gmra.mrb[0].mxu0 %v435
    %v471 = vpop.f32.mrb[0].mxu0
    %v472 = vadd.f32 %v417, %v471
    %v473 = vpop.f32.mrb[0].mxu0
    %v474 = vadd.f32 %v421, %v473
    %v475 = vpop.f32.mrb[0].mxu0
    %v476 = vpop.f32.mrb[0].mxu0
    %477 = vdwg.mxu0
    %478 = vmatprep.subr.bf16.mxu0 %v384
    %479 = vmatpush1.bf16.msra.mxu0 %v383
    %480 = vmatprep.subr.bf16.mxu0 %v388
    %481 = vmatpush1.bf16.msra.mxu0 %v387
    %482 = vmatprep.subr.bf16.mxu0 %v392
    %483 = vmatpush1.bf16.msra.mxu0 %v391
    %484 = vmatprep.subr.bf16.mxu0 %v396
    %485 = vmatpush1.bf16.msra.mxu0 %v395
    %486 = vmatprep.subr.bf16.mxu0 0
    %487 = vmatpush1.bf16.msra.mxu0 0
    %488 = vmatprep.subr.bf16.mxu0 0
    %489 = vmatpush1.bf16.msra.mxu0 0
    %490 = vmatprep.subr.bf16.mxu0 0
    %491 = vmatpush1.bf16.msra.mxu0 0
    %492 = vmatprep.subr.bf16.mxu0 0
    %493 = vmatpush1.bf16.msra.mxu0 0
    %494 = vmatprep.subr.bf16.mxu0 0
    %495 = vmatpush1.bf16.msra.mxu0 0
    %496 = vmatprep.subr.bf16.mxu0 0
    %497 = vmatpush1.bf16.msra.mxu0 0
    %498 = vmatprep.subr.bf16.mxu0 0
    %499 = vmatpush1.bf16.msra.mxu0 0
    %500 = vmatprep.subr.bf16.mxu0 0
    %501 = vmatpush1.bf16.msra.mxu0 0
    %502 = vmatprep.subr.bf16.mxu0 0
    %503 = vmatpush1.bf16.msra.mxu0 0
    %504 = vmatprep.subr.bf16.mxu0 0
    %505 = vmatpush1.bf16.msra.mxu0 0
    %506 = vmatprep.subr.bf16.mxu0 0
    %507 = vmatpush1.bf16.msra.mxu0 0
    %508 = vmatprep.subr.bf16.mxu0 0
    %509 = vmatpush1.bf16.msra.mxu0 0
    %510 = vmatprep.mubr.bf16.mxu0 0
    %511 = vmatmul.mubr.bf16.gmra.mrb[0].mxu0 %v435
    %v512 = vpop.f32.mrb[0].mxu0
    %v513 = vadd.f32 %v425, %v512
    %v514 = vpop.f32.mrb[0].mxu0
    %v515 = vadd.f32 %v429, %v514
    %v516 = vpop.f32.mrb[0].mxu0
    %v517 = vpop.f32.mrb[0].mxu0
    %518 = vdwg.mxu0
    %v519 = vmax.f32 %v472, 0.0
    %v520 = vmax.f32 %v474, 0.0
    %v521 = vmax.f32 %v513, 0.0
    %v522 = vmax.f32 %v515, 0.0
    %v523 = vpack.c.bf16 %v519, %v519
    %v524 = vpack.c.bf16 %v520, %v520
    %v525 = vpack.c.bf16 %v521, %v521
    %v526 = vpack.c.bf16 %v522, %v522
    %v527 = vld [vmem:[%s7] sm:$0xf]
    %v528 = vld [vmem:[%s7 + $0x4] sm:$0xf]
    %v529 = vld [vmem:[%s7 + $0x8] sm:$0xf]
    %v530 = vld [vmem:[%s7 + $0xc] sm:$0xf]
    %v531 = vld [vmem:[%s7 + $0x10] sm:$0xf]
    %v532 = vld [vmem:[%s7 + $0x14] sm:$0xf]
    %v533 = vld [vmem:[%s7 + $0x18] sm:$0xf]
    %v534 = vld [vmem:[%s7 + $0x1c] sm:$0xf]
    %v535 = vld [vmem:[%s7 + $0x20] sm:$0xf]
    %v536 = vld [vmem:[%s7 + $0x24] sm:$0xf]
    %v537 = vld [vmem:[%s7 + $0x28] sm:$0xf]
    %v538 = vld [vmem:[%s7 + $0x2c] sm:$0xf]
    %v539 = vld [vmem:[%s7 + $0x30] sm:$0xf]
    %v540 = vld [vmem:[%s7 + $0x34] sm:$0xf]
    %v541 = vld [vmem:[%s7 + $0x38] sm:$0xf]
    %v542 = vld [vmem:[%s7 + $0x3c] sm:$0xf]
    %v543 = vld [vmem:[%s7 + $0x40] sm:$0xf]
    %v544 = vld [vmem:[%s7 + $0x44] sm:$0xf]
    %v545 = vld [vmem:[%s7 + $0x48] sm:$0xf]
    %v546 = vld [vmem:[%s7 + $0x4c] sm:$0xf]
    %v547 = vld [vmem:[%s7 + $0x50] sm:$0xf]
    %v548 = vld [vmem:[%s7 + $0x54] sm:$0xf]
    %v549 = vld [vmem:[%s7 + $0x58] sm:$0xf]
    %v550 = vld [vmem:[%s7 + $0x5c] sm:$0xf]
    %v551 = vld [vmem:[%s7 + $0x60] sm:$0xf]
    %v552 = vld [vmem:[%s7 + $0x64] sm:$0xf]
    %v553 = vld [vmem:[%s7 + $0x68] sm:$0xf]
    %v554 = vld [vmem:[%s7 + $0x6c] sm:$0xf]
    %v555 = vld [vmem:[%s7 + $0x70] sm:$0xf]
    %v556 = vld [vmem:[%s7 + $0x74] sm:$0xf]
    %v557 = vld [vmem:[%s7 + $0x78] sm:$0xf]
    %v558 = vld [vmem:[%s7 + $0x7c] sm:$0xf]
    %v559 = vld [vmem:[%s7 + $0x80] sm:$0xf]
    %v560 = vld [vmem:[%s7 + $0x84] sm:$0xf]
    %v561 = vld [vmem:[%s7 + $0x88] sm:$0xf]
    %v562 = vld [vmem:[%s7 + $0x8c] sm:$0xf]
    %v563 = vld [vmem:[%s7 + $0x90] sm:$0xf]
    %v564 = vld [vmem:[%s7 + $0x94] sm:$0xf]
    %v565 = vld [vmem:[%s7 + $0x98] sm:$0xf]
    %v566 = vld [vmem:[%s7 + $0x9c] sm:$0xf]
    %v567 = vld [vmem:[%s7 + $0xa0] sm:$0xf]
    %v568 = vld [vmem:[%s7 + $0xa4] sm:$0xf]
    %v569 = vld [vmem:[%s7 + $0xa8] sm:$0xf]
    %v570 = vld [vmem:[%s7 + $0xac] sm:$0xf]
    %v571 = vld [vmem:[%s7 + $0xb0] sm:$0xf]
    %v572 = vld [vmem:[%s7 + $0xb4] sm:$0xf]
    %v573 = vld [vmem:[%s7 + $0xb8] sm:$0xf]
    %v574 = vld [vmem:[%s7 + $0xbc] sm:$0xf]
    %v575 = vld [vmem:[%s7 + $0xc0] sm:$0xf]
    %v576 = vld [vmem:[%s7 + $0xc4] sm:$0xf]
    %v577 = vld [vmem:[%s7 + $0xc8] sm:$0xf]
    %v578 = vld [vmem:[%s7 + $0xcc] sm:$0xf]
    %v579 = vld [vmem:[%s7 + $0xd0] sm:$0xf]
    %v580 = vld [vmem:[%s7 + $0xd4] sm:$0xf]
    %v581 = vld [vmem:[%s7 + $0xd8] sm:$0xf]
    %v582 = vld [vmem:[%s7 + $0xdc] sm:$0xf]
    %v583 = vld [vmem:[%s7 + $0xe0] sm:$0xf]
    %v584 = vld [vmem:[%s7 + $0xe4] sm:$0xf]
    %v585 = vld [vmem:[%s7 + $0xe8] sm:$0xf]
    %v586 = vld [vmem:[%s7 + $0xec] sm:$0xf]
    %v587 = vld [vmem:[%s7 + $0xf0] sm:$0xf]
    %v588 = vld [vmem:[%s7 + $0xf4] sm:$0xf]
    %v589 = vld [vmem:[%s7 + $0xf8] sm:$0xf]
    %v590 = vld [vmem:[%s7 + $0xfc] sm:$0xf]
    %v591 = vld [vmem:[%s8] sm:$0x1]
    %v656 = vunpack.c.l.b16 %v527
    %v657 = vunpack.c.l.b16 %v528
    %v658 = vunpack.c.l.b16 %v529
    %v659 = vunpack.c.l.b16 %v530
    %v660 = vunpack.c.l.b16 %v531
    %v661 = vunpack.c.l.b16 %v532
    %v662 = vunpack.c.l.b16 %v533
    %v663 = vunpack.c.l.b16 %v534
    %v664 = vunpack.c.l.b16 %v535
    %v665 = vunpack.c.l.b16 %v536
    %v666 = vunpack.c.l.b16 %v537
    %v667 = vunpack.c.l.b16 %v538
    %v668 = vunpack.c.l.b16 %v539
    %v669 = vunpack.c.l.b16 %v540
    %v670 = vunpack.c.l.b16 %v541
    %v671 = vunpack.c.l.b16 %v542
    %v672 = vunpack.c.l.b16 %v543
    %v673 = vunpack.c.l.b16 %v544
    %v674 = vunpack.c.l.b16 %v545
    %v675 = vunpack.c.l.b16 %v546
    %v676 = vunpack.c.l.b16 %v547
    %v677 = vunpack.c.l.b16 %v548
    %v678 = vunpack.c.l.b16 %v549
    %v679 = vunpack.c.l.b16 %v550
    %v680 = vunpack.c.l.b16 %v551
    %v681 = vunpack.c.l.b16 %v552
    %v682 = vunpack.c.l.b16 %v553
    %v683 = vunpack.c.l.b16 %v554
    %v684 = vunpack.c.l.b16 %v555
    %v685 = vunpack.c.l.b16 %v556
    %v686 = vunpack.c.l.b16 %v557
    %v687 = vunpack.c.l.b16 %v558
    %v688 = vunpack.c.l.b16 %v559
    %v689 = vunpack.c.l.b16 %v560
    %v690 = vunpack.c.l.b16 %v561
    %v691 = vunpack.c.l.b16 %v562
    %v692 = vunpack.c.l.b16 %v563
    %v693 = vunpack.c.l.b16 %v564
    %v694 = vunpack.c.l.b16 %v565
    %v695 = vunpack.c.l.b16 %v566
    %v696 = vunpack.c.l.b16 %v567
    %v697 = vunpack.c.l.b16 %v568
    %v698 = vunpack.c.l.b16 %v569
    %v699 = vunpack.c.l.b16 %v570
    %v700 = vunpack.c.l.b16 %v571
    %v701 = vunpack.c.l.b16 %v572
    %v702 = vunpack.c.l.b16 %v573
    %v703 = vunpack.c.l.b16 %v574
    %v704 = vunpack.c.l.b16 %v575
    %v705 = vunpack.c.l.b16 %v576
    %v706 = vunpack.c.l.b16 %v577
    %v707 = vunpack.c.l.b16 %v578
    %v708 = vunpack.c.l.b16 %v579
    %v709 = vunpack.c.l.b16 %v580
    %v710 = vunpack.c.l.b16 %v581
    %v711 = vunpack.c.l.b16 %v582
    %v712 = vunpack.c.l.b16 %v583
    %v713 = vunpack.c.l.b16 %v584
    %v714 = vunpack.c.l.b16 %v585
    %v715 = vunpack.c.l.b16 %v586
    %v716 = vunpack.c.l.b16 %v587
    %v717 = vunpack.c.l.b16 %v588
    %v718 = vunpack.c.l.b16 %v589
    %v719 = vunpack.c.l.b16 %v590
    %v720 = vpack.c.b16 %v657, %v656
    %v721 = vpack.c.b16 %v659, %v658
    %v722 = vpack.c.b16 %v661, %v660
    %v723 = vpack.c.b16 %v663, %v662
    %v724 = vpack.c.b16 %v665, %v664
    %v725 = vpack.c.b16 %v667, %v666
    %v726 = vpack.c.b16 %v669, %v668
    %v727 = vpack.c.b16 %v671, %v670
    %v728 = vpack.c.b16 %v673, %v672
    %v729 = vpack.c.b16 %v675, %v674
    %v730 = vpack.c.b16 %v677, %v676
    %v731 = vpack.c.b16 %v679, %v678
    %v732 = vpack.c.b16 %v681, %v680
    %v733 = vpack.c.b16 %v683, %v682
    %v734 = vpack.c.b16 %v685, %v684
    %v735 = vpack.c.b16 %v687, %v686
    %v736 = vpack.c.b16 %v689, %v688
    %v737 = vpack.c.b16 %v691, %v690
    %v738 = vpack.c.b16 %v693, %v692
    %v739 = vpack.c.b16 %v695, %v694
    %v740 = vpack.c.b16 %v697, %v696
    %v741 = vpack.c.b16 %v699, %v698
    %v742 = vpack.c.b16 %v701, %v700
    %v743 = vpack.c.b16 %v703, %v702
    %v744 = vpack.c.b16 %v705, %v704
    %v745 = vpack.c.b16 %v707, %v706
    %v746 = vpack.c.b16 %v709, %v708
    %v747 = vpack.c.b16 %v711, %v710
    %v748 = vpack.c.b16 %v713, %v712
    %v749 = vpack.c.b16 %v715, %v714
    %v750 = vpack.c.b16 %v717, %v716
    %v751 = vpack.c.b16 %v719, %v718
    %784 = vmatprep.subr.bf16.mxu0 0
    %785 = vmatpush1.bf16.msra.mxu0 %v720
    %786 = vmatprep.subr.bf16.mxu0 0
    %787 = vmatpush1.bf16.msra.mxu0 %v721
    %788 = vmatprep.subr.bf16.mxu0 0
    %789 = vmatpush1.bf16.msra.mxu0 %v722
    %790 = vmatprep.subr.bf16.mxu0 0
    %791 = vmatpush1.bf16.msra.mxu0 %v723
    %792 = vmatprep.subr.bf16.mxu0 0
    %793 = vmatpush1.bf16.msra.mxu0 %v724
    %794 = vmatprep.subr.bf16.mxu0 0
    %795 = vmatpush1.bf16.msra.mxu0 %v725
    %796 = vmatprep.subr.bf16.mxu0 0
    %797 = vmatpush1.bf16.msra.mxu0 %v726
    %798 = vmatprep.subr.bf16.mxu0 0
    %799 = vmatpush1.bf16.msra.mxu0 %v727
    %800 = vmatprep.subr.bf16.mxu0 0
    %801 = vmatpush1.bf16.msra.mxu0 %v728
    %802 = vmatprep.subr.bf16.mxu0 0
    %803 = vmatpush1.bf16.msra.mxu0 %v729
    %804 = vmatprep.subr.bf16.mxu0 0
    %805 = vmatpush1.bf16.msra.mxu0 %v730
    %806 = vmatprep.subr.bf16.mxu0 0
    %807 = vmatpush1.bf16.msra.mxu0 %v731
    %808 = vmatprep.subr.bf16.mxu0 0
    %809 = vmatpush1.bf16.msra.mxu0 %v732
    %810 = vmatprep.subr.bf16.mxu0 0
    %811 = vmatpush1.bf16.msra.mxu0 %v733
    %812 = vmatprep.subr.bf16.mxu0 0
    %813 = vmatpush1.bf16.msra.mxu0 %v734
    %814 = vmatprep.subr.bf16.mxu0 0
    %815 = vmatpush1.bf16.msra.mxu0 %v735
    %816 = vmatprep.mubr.bf16.mxu0 %v524
    %817 = vmatmul.mubr.bf16.gmra.mrb[0].mxu0 %v523
    %v818 = vpop.f32.mrb[0].mxu0
    %v819 = vadd.f32 %v591, %v818
    %v820 = vpop.f32.mrb[0].mxu0
    %v821 = vpop.f32.mrb[0].mxu0
    %v822 = vpop.f32.mrb[0].mxu0
    %823 = vdwg.mxu0
    %824 = vmatprep.subr.bf16.mxu0 0
    %825 = vmatpush1.bf16.msra.mxu0 %v736
    %826 = vmatprep.subr.bf16.mxu0 0
    %827 = vmatpush1.bf16.msra.mxu0 %v737
    %828 = vmatprep.subr.bf16.mxu0 0
    %829 = vmatpush1.bf16.msra.mxu0 %v738
    %830 = vmatprep.subr.bf16.mxu0 0
    %831 = vmatpush1.bf16.msra.mxu0 %v739
    %832 = vmatprep.subr.bf16.mxu0 0
    %833 = vmatpush1.bf16.msra.mxu0 %v740
    %834 = vmatprep.subr.bf16.mxu0 0
    %835 = vmatpush1.bf16.msra.mxu0 %v741
    %836 = vmatprep.subr.bf16.mxu0 0
    %837 = vmatpush1.bf16.msra.mxu0 %v742
    %838 = vmatprep.subr.bf16.mxu0 0
    %839 = vmatpush1.bf16.msra.mxu0 %v743
    %840 = vmatprep.subr.bf16.mxu0 0
    %841 = vmatpush1.bf16.msra.mxu0 %v744
    %842 = vmatprep.subr.bf16.mxu0 0
    %843 = vmatpush1.bf16.msra.mxu0 %v745
    %844 = vmatprep.subr.bf16.mxu0 0
    %845 = vmatpush1.bf16.msra.mxu0 %v746
    %846 = vmatprep.subr.bf16.mxu0 0
    %847 = vmatpush1.bf16.msra.mxu0 %v747
    %848 = vmatprep.subr.bf16.mxu0 0
    %849 = vmatpush1.bf16.msra.mxu0 %v748
    %850 = vmatprep.subr.bf16.mxu0 0
    %851 = vmatpush1.bf16.msra.mxu0 %v749
    %852 = vmatprep.subr.bf16.mxu0 0
    %853 = vmatpush1.bf16.msra.mxu0 %v750
    %854 = vmatprep.subr.bf16.mxu0 0
    %855 = vmatpush1.bf16.msra.mxu0 %v751
    %856 = vmatprep.mubr.bf16.mxu0 %v526
    %857 = vmatmul.mubr.bf16.gmra.mrb[0].mxu0 %v525
    %v858 = vpop.f32.mrb[0].mxu0
    %v859 = vadd.f32 %v819, %v858
    %v860 = vpop.f32.mrb[0].mxu0
    %v861 = vpop.f32.mrb[0].mxu0
    %v862 = vpop.f32.mrb[0].mxu0
    %863 = vdwg.mxu0
    %v864 = vadd.f32 %v314, %v859
    %vm865 = vcmask 516096
    %866 = vst.msk [vmem:[#allocation2] sm:$0x1] %vm865, %v864
    // Predicated region
    $region38: #{tpu_custom_call.1} parent=1 // pred_check
      _
    $region39: #{tpu_custom_call.1} parent=1 // pred_check_branch
      %868 = sbr.rel (0) target = $region41
    $region40: #{tpu_custom_call.1} parent=1 // pred_region
      %s870 = ssub.s32 16, 16
      %871 = vsyncadd [#allocation3], %s870
      %s873 = sshll.u32 [#allocation2], 4
      %s874 = int_to_ptr.vmem [resolvable:$true] %s873
      %876 = dma.vmem_to_hbm [thread:$0]  %s874, 16, %s9, [#allocation3]
    $region41: #{tpu_custom_call.1} parent=1 // pred_fallthru
      _
    // Predicated region
    $region42: #{tpu_custom_call.1} parent=1 // pred_check
      _
    $region43: #{tpu_custom_call.1} parent=1 // pred_check_branch
      %878 = sbr.rel (0) target = $region45
    $region44: #{tpu_custom_call.1} parent=1 // pred_region
      %879 = dma.done [#allocation3], 16
    $region45: #{tpu_custom_call.1} parent=1 // pred_fallthru
      _
    %880 = vsyncpa [#allocation3], 1

</llo_original>
